<compile_context>
chip_gen: v5e
topology: v5e:2x2
jax: 0.10.0
libtpu: 0.0.40
codegen_flags: <defaults>
</compile_context>

<pallas_src>
import functools

import jax
import jax.numpy as jnp
import numpy as np
from jax import lax
from jax.experimental import pallas as pl
from jax.experimental.pallas import tpu as pltpu

_LANE = 128
_SUB = 8
_UNROLL_MAX = 32                 # fully unroll the forecast loop up to this horizon
_VMEM_BLOCK_BUDGET = 20 * 1024 * 1024   # bytes for 2*(in_block + out_block)
_VMEM_LIMIT_BYTES = 32 * 1024 * 1024    # scoped VMEM limit (safe on v5e/v6e/v7x)
_MAX_TILE_COLS = 4096            # hard cap: 4096 cols * 8 sublanes = 32k series / step


# ----------------------------------------------------------------------------
# Pallas kernel: ARIMA(P, 1, 0) forecast recursion on a sublane+lane dense tile.
#   x_ref: (P+1, 8, tile_cols)      last P+1 observations, series packed on
#                                   (sublane, lane)
#   o_ref: (pred_len, 8, tile_cols) forecasts for those series
# ----------------------------------------------------------------------------
def _arima_forecast_kernel(x_ref, o_ref, *, phi, pred_len):
    P = len(phi)

    # Last P+1 observations, each a full (8, tile_cols) slab.
    rows = [x_ref[i] for i in range(P + 1)]

    # First differences (d = 1), oldest ... newest.
    diffs = tuple(rows[i + 1] - rows[i] for i in range(P))
    level = rows[P]                       # last observed level

    def ar_step(level, diffs):
        # AR step on the differenced series: d_hat = sum_k phi[k] * diff[-1-k]
        d_hat = phi[0] * diffs[P - 1]
        for k in range(1, P):
            d_hat = d_hat + phi[k] * diffs[P - 1 - k]
        level = level + d_hat             # integrate (undo differencing)
        diffs = diffs[1:] + (d_hat,)      # rotate window (pure structure, no copy)
        return level, diffs

    if pred_len <= _UNROLL_MAX:
        # Short horizon: fully unrolled, per-step store.
        for t in range(pred_len):
            level, diffs = ar_step(level, diffs)
            o_ref[t] = level
    else:
        # Long horizon: serial fori_loop keeps bundle size & live ranges bounded.
        def body(t, carry):
            level, diffs = carry
            level, diffs = ar_step(level, diffs)
            o_ref[t] = level
            return (level, diffs)

        lax.fori_loop(0, pred_len, body, (level, diffs), unroll=4)


# ----------------------------------------------------------------------------
# Wrapper: slice the tail window, fold B*C onto (sublane, lane), tile lanes.
# ----------------------------------------------------------------------------
def arima_forecast(x, *, pred_len, phi):
    """x: [B, L, C] float array.  Returns [B, pred_len, C] float32 forecasts."""
    B, L, C = x.shape
    P = len(phi)
    assert L > P, "series must be longer than the AR order"
    pred_len = int(pred_len)

    x = x.astype(jnp.float32)

    # Only the last P+1 timesteps are ever used by the recursion.
    tail = x[:, L - P - 1:, :]                               # (B, P+1, C)

    # Dense layout: time outermost, B*C packed onto (sublane, lane).
    N = B * C
    tail = jnp.transpose(tail, (1, 0, 2)).reshape(P + 1, N)  # (P+1, B*C)

    # --- tile sizing -------------------------------------------------------
    # n_groups = number of full (8, 128) series blocks needed.
    n_groups = pl.cdiv(N, _SUB * _LANE)

    # Max tile width from the VMEM budget: 2*(in + out) double-buffered blocks.
    bytes_per_col = (P + 1 + pred_len) * _SUB * 4
    max_tile_cols = max(_LANE, (_VMEM_BLOCK_BUDGET // (2 * bytes_per_col)) // _LANE * _LANE)
    max_tile_cols = min(max_tile_cols, _MAX_TILE_COLS)
    max_groups = max(1, max_tile_cols // _LANE)

    tile_groups = min(n_groups, max_groups)
    num_tiles = pl.cdiv(n_groups, tile_groups)
    # v7x megacore: keep >= 2 parallel grid steps when there is enough work.
    if num_tiles == 1 and n_groups >= 2:
        tile_groups = pl.cdiv(n_groups, 2)
        num_tiles = pl.cdiv(n_groups, tile_groups)

    tile_cols = tile_groups * _LANE
    total_cols = num_tiles * tile_cols
    n_pad = _SUB * total_cols

    if n_pad != N:
        tail = jnp.pad(tail, ((0, 0), (0, n_pad - N)))       # zero pad (sliced away)

    # (P+1, 8, total_cols): every timestep is a stack of full (8,128) tiles.
    tail = tail.reshape(P + 1, _SUB, total_cols)

    kernel = functools.partial(
        _arima_forecast_kernel,
        phi=tuple(float(p) for p in phi),
        pred_len=pred_len,
    )

    out = pl.pallas_call(
        kernel,
        out_shape=jax.ShapeDtypeStruct((pred_len, _SUB, total_cols), jnp.float32),
        grid_spec=pltpu.PrefetchScalarGridSpec(
            num_scalar_prefetch=0,
            grid=(num_tiles,),
            in_specs=[pl.BlockSpec((P + 1, _SUB, tile_cols), lambda n: (0, 0, n))],
            out_specs=pl.BlockSpec((pred_len, _SUB, tile_cols), lambda n: (0, 0, n)),
        ),
        compiler_params=pltpu.CompilerParams(
            dimension_semantics=("parallel",),
            vmem_limit_bytes=_VMEM_LIMIT_BYTES,
        ),
    )(tail)

    # Undo packing: (pred_len, 8, total_cols) -> (B, pred_len, C)
    out = out.reshape(pred_len, n_pad)[:, :N].reshape(pred_len, B, C)
    return jnp.transpose(out, (1, 0, 2))


# ----------------------------------------------------------------------------
# Pure-JAX reference (same fixed-order ARIMA recursion) for a sanity check.
# ----------------------------------------------------------------------------
def arima_forecast_ref(x, *, pred_len, phi):
    x = x.astype(jnp.float32)
    B, L, C = x.shape
    P = len(phi)
    diffs = x[:, L - P:, :] - x[:, L - P - 1: L - 1, :]      # (B, P, C)
    level = x[:, L - 1, :]                                   # (B, C)
    outs = []
    for _ in range(int(pred_len)):
        d_hat = jnp.zeros_like(level)
        for k in range(P):
            d_hat = d_hat + phi[k] * diffs[:, P - 1 - k, :]
        level = level + d_hat
        outs.append(level)
        diffs = jnp.concatenate([diffs[:, 1:, :], d_hat[:, None, :]], axis=1)
    return jnp.stack(outs, axis=1)                           # (B, pred_len, C)


if __name__ == "__main__":
    # Deterministic "parameters" of the fixed-order ARIMA(P, 1, 0) model.
    PHI = np.array([0.5, 0.3, 0.1], dtype=np.float32)        # stationary AR coeffs

    key = jax.random.PRNGKey(0)

    # Case 1: small shapes consistent with the module's forward (x = [B, L, C]),
    # short horizon -> fully-unrolled single-tile path.
    B, L, C, PRED_LEN = 2, 16, 8, 8
    k1, k2 = jax.random.split(key)
    x = jax.random.normal(k1, (B, L, C), dtype=jnp.float32)
    out = jax.block_until_ready(arima_forecast(x, pred_len=PRED_LEN, phi=PHI))
    ref = arima_forecast_ref(x, pred_len=PRED_LEN, phi=PHI)
    assert out.shape == (B, PRED_LEN, C), out.shape
    np.testing.assert_allclose(np.asarray(out), np.asarray(ref), rtol=1e-4, atol=1e-4)

    # Case 2: wider batch*channels and longer horizon -> fori_loop path,
    # multi-tile parallel grid (exercises megacore split).
    B2, L2, C2, PRED_LEN2 = 4, 32, 512, 40
    x2 = jax.random.normal(k2, (B2, L2, C2), dtype=jnp.float32)
    out2 = jax.block_until_ready(arima_forecast(x2, pred_len=PRED_LEN2, phi=PHI))
    ref2 = arima_forecast_ref(x2, pred_len=PRED_LEN2, phi=PHI)
    assert out2.shape == (B2, PRED_LEN2, C2), out2.shape
    np.testing.assert_allclose(np.asarray(out2), np.asarray(ref2), rtol=1e-4, atol=1e-4)

    print("KERNEL_OK")
</pallas_src>

<mosaic_0001>
module attributes {stable_mosaic.version = 11 : i64} {
  func.func @_arima_forecast_kernel(%arg0: i32, %arg1: memref<4x8x128xf32, #tpu.memory_space<vmem>>, %arg2: memref<8x8x128xf32, #tpu.memory_space<vmem>>) attributes {dimension_semantics = [#tpu.dimension_semantics<parallel>], iteration_bounds = array<i64: 1>, scalar_prefetch = 0 : i64, scratch_operands = 0 : i64, tpu.core_type = #tpu.core_type<tc>, window_params = [{transform_indices = @transform_0, window_bounds = array<i64: 4, 8, 128>}, {transform_indices = @transform_1, window_bounds = array<i64: 8, 8, 128>}]} {
    %c0 = arith.constant 0 : index
    %c0_0 = arith.constant 0 : index
    %c0_1 = arith.constant 0 : index
    %0 = vector.load %arg1[%c0, %c0_0, %c0_1] : memref<4x8x128xf32, #tpu.memory_space<vmem>>, vector<1x8x128xf32>
    %1 = vector.shape_cast %0 : vector<1x8x128xf32> to vector<8x128xf32>
    %c1 = arith.constant 1 : index
    %c0_2 = arith.constant 0 : index
    %c0_3 = arith.constant 0 : index
    %2 = vector.load %arg1[%c1, %c0_2, %c0_3] : memref<4x8x128xf32, #tpu.memory_space<vmem>>, vector<1x8x128xf32>
    %3 = vector.shape_cast %2 : vector<1x8x128xf32> to vector<8x128xf32>
    %c2 = arith.constant 2 : index
    %c0_4 = arith.constant 0 : index
    %c0_5 = arith.constant 0 : index
    %4 = vector.load %arg1[%c2, %c0_4, %c0_5] : memref<4x8x128xf32, #tpu.memory_space<vmem>>, vector<1x8x128xf32>
    %5 = vector.shape_cast %4 : vector<1x8x128xf32> to vector<8x128xf32>
    %c3 = arith.constant 3 : index
    %c0_6 = arith.constant 0 : index
    %c0_7 = arith.constant 0 : index
    %6 = vector.load %arg1[%c3, %c0_6, %c0_7] : memref<4x8x128xf32, #tpu.memory_space<vmem>>, vector<1x8x128xf32>
    %7 = vector.shape_cast %6 : vector<1x8x128xf32> to vector<8x128xf32>
    %8 = arith.subf %3, %1 : vector<8x128xf32>
    %9 = arith.subf %5, %3 : vector<8x128xf32>
    %10 = arith.subf %7, %5 : vector<8x128xf32>
    %cst = arith.constant 5.000000e-01 : f32
    %11 = vector.broadcast %cst : f32 to vector<8x128xf32>
    %12 = arith.mulf %11, %10 : vector<8x128xf32>
    %cst_8 = arith.constant 3.000000e-01 : f32
    %13 = vector.broadcast %cst_8 : f32 to vector<8x128xf32>
    %14 = arith.mulf %13, %9 : vector<8x128xf32>
    %15 = arith.addf %12, %14 : vector<8x128xf32>
    %cst_9 = arith.constant 1.000000e-01 : f32
    %16 = vector.broadcast %cst_9 : f32 to vector<8x128xf32>
    %17 = arith.mulf %16, %8 : vector<8x128xf32>
    %18 = arith.addf %15, %17 : vector<8x128xf32>
    %19 = arith.addf %7, %18 : vector<8x128xf32>
    %c0_10 = arith.constant 0 : index
    %c0_11 = arith.constant 0 : index
    %c0_12 = arith.constant 0 : index
    %20 = vector.load %arg2[%c0_10, %c0_11, %c0_12] : memref<8x8x128xf32, #tpu.memory_space<vmem>>, vector<1x8x128xf32>
    %21 = vector.shape_cast %20 : vector<1x8x128xf32> to vector<8x128xf32>
    %22 = vector.shape_cast %19 : vector<8x128xf32> to vector<1x8x128xf32>
    tpu.vector_store %arg2[%c0_10, %c0_11, %c0_12], %22 {strides = array<i32>} : memref<8x8x128xf32, #tpu.memory_space<vmem>>, vector<1x8x128xf32>,
    %cst_13 = arith.constant 5.000000e-01 : f32
    %23 = vector.broadcast %cst_13 : f32 to vector<8x128xf32>
    %24 = arith.mulf %23, %18 : vector<8x128xf32>
    %cst_14 = arith.constant 3.000000e-01 : f32
    %25 = vector.broadcast %cst_14 : f32 to vector<8x128xf32>
    %26 = arith.mulf %25, %10 : vector<8x128xf32>
    %27 = arith.addf %24, %26 : vector<8x128xf32>
    %cst_15 = arith.constant 1.000000e-01 : f32
    %28 = vector.broadcast %cst_15 : f32 to vector<8x128xf32>
    %29 = arith.mulf %28, %9 : vector<8x128xf32>
    %30 = arith.addf %27, %29 : vector<8x128xf32>
    %31 = arith.addf %19, %30 : vector<8x128xf32>
    %c1_16 = arith.constant 1 : index
    %c0_17 = arith.constant 0 : index
    %c0_18 = arith.constant 0 : index
    %32 = vector.load %arg2[%c1_16, %c0_17, %c0_18] : memref<8x8x128xf32, #tpu.memory_space<vmem>>, vector<1x8x128xf32>
    %33 = vector.shape_cast %32 : vector<1x8x128xf32> to vector<8x128xf32>
    %34 = vector.shape_cast %31 : vector<8x128xf32> to vector<1x8x128xf32>
    tpu.vector_store %arg2[%c1_16, %c0_17, %c0_18], %34 {strides = array<i32>} : memref<8x8x128xf32, #tpu.memory_space<vmem>>, vector<1x8x128xf32>,
    %cst_19 = arith.constant 5.000000e-01 : f32
    %35 = vector.broadcast %cst_19 : f32 to vector<8x128xf32>
    %36 = arith.mulf %35, %30 : vector<8x128xf32>
    %cst_20 = arith.constant 3.000000e-01 : f32
    %37 = vector.broadcast %cst_20 : f32 to vector<8x128xf32>
    %38 = arith.mulf %37, %18 : vector<8x128xf32>
    %39 = arith.addf %36, %38 : vector<8x128xf32>
    %cst_21 = arith.constant 1.000000e-01 : f32
    %40 = vector.broadcast %cst_21 : f32 to vector<8x128xf32>
    %41 = arith.mulf %40, %10 : vector<8x128xf32>
    %42 = arith.addf %39, %41 : vector<8x128xf32>
    %43 = arith.addf %31, %42 : vector<8x128xf32>
    %c2_22 = arith.constant 2 : index
    %c0_23 = arith.constant 0 : index
    %c0_24 = arith.constant 0 : index
    %44 = vector.load %arg2[%c2_22, %c0_23, %c0_24] : memref<8x8x128xf32, #tpu.memory_space<vmem>>, vector<1x8x128xf32>
    %45 = vector.shape_cast %44 : vector<1x8x128xf32> to vector<8x128xf32>
    %46 = vector.shape_cast %43 : vector<8x128xf32> to vector<1x8x128xf32>
    tpu.vector_store %arg2[%c2_22, %c0_23, %c0_24], %46 {strides = array<i32>} : memref<8x8x128xf32, #tpu.memory_space<vmem>>, vector<1x8x128xf32>,
    %cst_25 = arith.constant 5.000000e-01 : f32
    %47 = vector.broadcast %cst_25 : f32 to vector<8x128xf32>
    %48 = arith.mulf %47, %42 : vector<8x128xf32>
    %cst_26 = arith.constant 3.000000e-01 : f32
    %49 = vector.broadcast %cst_26 : f32 to vector<8x128xf32>
    %50 = arith.mulf %49, %30 : vector<8x128xf32>
    %51 = arith.addf %48, %50 : vector<8x128xf32>
    %cst_27 = arith.constant 1.000000e-01 : f32
    %52 = vector.broadcast %cst_27 : f32 to vector<8x128xf32>
    %53 = arith.mulf %52, %18 : vector<8x128xf32>
    %54 = arith.addf %51, %53 : vector<8x128xf32>
    %55 = arith.addf %43, %54 : vector<8x128xf32>
    %c3_28 = arith.constant 3 : index
    %c0_29 = arith.constant 0 : index
    %c0_30 = arith.constant 0 : index
    %56 = vector.load %arg2[%c3_28, %c0_29, %c0_30] : memref<8x8x128xf32, #tpu.memory_space<vmem>>, vector<1x8x128xf32>
    %57 = vector.shape_cast %56 : vector<1x8x128xf32> to vector<8x128xf32>
    %58 = vector.shape_cast %55 : vector<8x128xf32> to vector<1x8x128xf32>
    tpu.vector_store %arg2[%c3_28, %c0_29, %c0_30], %58 {strides = array<i32>} : memref<8x8x128xf32, #tpu.memory_space<vmem>>, vector<1x8x128xf32>,
    %cst_31 = arith.constant 5.000000e-01 : f32
    %59 = vector.broadcast %cst_31 : f32 to vector<8x128xf32>
    %60 = arith.mulf %59, %54 : vector<8x128xf32>
    %cst_32 = arith.constant 3.000000e-01 : f32
    %61 = vector.broadcast %cst_32 : f32 to vector<8x128xf32>
    %62 = arith.mulf %61, %42 : vector<8x128xf32>
    %63 = arith.addf %60, %62 : vector<8x128xf32>
    %cst_33 = arith.constant 1.000000e-01 : f32
    %64 = vector.broadcast %cst_33 : f32 to vector<8x128xf32>
    %65 = arith.mulf %64, %30 : vector<8x128xf32>
    %66 = arith.addf %63, %65 : vector<8x128xf32>
    %67 = arith.addf %55, %66 : vector<8x128xf32>
    %c4 = arith.constant 4 : index
    %c0_34 = arith.constant 0 : index
    %c0_35 = arith.constant 0 : index
    %68 = vector.load %arg2[%c4, %c0_34, %c0_35] : memref<8x8x128xf32, #tpu.memory_space<vmem>>, vector<1x8x128xf32>
    %69 = vector.shape_cast %68 : vector<1x8x128xf32> to vector<8x128xf32>
    %70 = vector.shape_cast %67 : vector<8x128xf32> to vector<1x8x128xf32>
    tpu.vector_store %arg2[%c4, %c0_34, %c0_35], %70 {strides = array<i32>} : memref<8x8x128xf32, #tpu.memory_space<vmem>>, vector<1x8x128xf32>,
    %cst_36 = arith.constant 5.000000e-01 : f32
    %71 = vector.broadcast %cst_36 : f32 to vector<8x128xf32>
    %72 = arith.mulf %71, %66 : vector<8x128xf32>
    %cst_37 = arith.constant 3.000000e-01 : f32
    %73 = vector.broadcast %cst_37 : f32 to vector<8x128xf32>
    %74 = arith.mulf %73, %54 : vector<8x128xf32>
    %75 = arith.addf %72, %74 : vector<8x128xf32>
    %cst_38 = arith.constant 1.000000e-01 : f32
    %76 = vector.broadcast %cst_38 : f32 to vector<8x128xf32>
    %77 = arith.mulf %76, %42 : vector<8x128xf32>
    %78 = arith.addf %75, %77 : vector<8x128xf32>
    %79 = arith.addf %67, %78 : vector<8x128xf32>
    %c5 = arith.constant 5 : index
    %c0_39 = arith.constant 0 : index
    %c0_40 = arith.constant 0 : index
    %80 = vector.load %arg2[%c5, %c0_39, %c0_40] : memref<8x8x128xf32, #tpu.memory_space<vmem>>, vector<1x8x128xf32>
    %81 = vector.shape_cast %80 : vector<1x8x128xf32> to vector<8x128xf32>
    %82 = vector.shape_cast %79 : vector<8x128xf32> to vector<1x8x128xf32>
    tpu.vector_store %arg2[%c5, %c0_39, %c0_40], %82 {strides = array<i32>} : memref<8x8x128xf32, #tpu.memory_space<vmem>>, vector<1x8x128xf32>,
    %cst_41 = arith.constant 5.000000e-01 : f32
    %83 = vector.broadcast %cst_41 : f32 to vector<8x128xf32>
    %84 = arith.mulf %83, %78 : vector<8x128xf32>
    %cst_42 = arith.constant 3.000000e-01 : f32
    %85 = vector.broadcast %cst_42 : f32 to vector<8x128xf32>
    %86 = arith.mulf %85, %66 : vector<8x128xf32>
    %87 = arith.addf %84, %86 : vector<8x128xf32>
    %cst_43 = arith.constant 1.000000e-01 : f32
    %88 = vector.broadcast %cst_43 : f32 to vector<8x128xf32>
    %89 = arith.mulf %88, %54 : vector<8x128xf32>
    %90 = arith.addf %87, %89 : vector<8x128xf32>
    %91 = arith.addf %79, %90 : vector<8x128xf32>
    %c6 = arith.constant 6 : index
    %c0_44 = arith.constant 0 : index
    %c0_45 = arith.constant 0 : index
    %92 = vector.load %arg2[%c6, %c0_44, %c0_45] : memref<8x8x128xf32, #tpu.memory_space<vmem>>, vector<1x8x128xf32>
    %93 = vector.shape_cast %92 : vector<1x8x128xf32> to vector<8x128xf32>
    %94 = vector.shape_cast %91 : vector<8x128xf32> to vector<1x8x128xf32>
    tpu.vector_store %arg2[%c6, %c0_44, %c0_45], %94 {strides = array<i32>} : memref<8x8x128xf32, #tpu.memory_space<vmem>>, vector<1x8x128xf32>,
    %cst_46 = arith.constant 5.000000e-01 : f32
    %95 = vector.broadcast %cst_46 : f32 to vector<8x128xf32>
    %96 = arith.mulf %95, %90 : vector<8x128xf32>
    %cst_47 = arith.constant 3.000000e-01 : f32
    %97 = vector.broadcast %cst_47 : f32 to vector<8x128xf32>
    %98 = arith.mulf %97, %78 : vector<8x128xf32>
    %99 = arith.addf %96, %98 : vector<8x128xf32>
    %cst_48 = arith.constant 1.000000e-01 : f32
    %100 = vector.broadcast %cst_48 : f32 to vector<8x128xf32>
    %101 = arith.mulf %100, %66 : vector<8x128xf32>
    %102 = arith.addf %99, %101 : vector<8x128xf32>
    %103 = arith.addf %91, %102 : vector<8x128xf32>
    %c7 = arith.constant 7 : index
    %c0_49 = arith.constant 0 : index
    %c0_50 = arith.constant 0 : index
    %104 = vector.load %arg2[%c7, %c0_49, %c0_50] : memref<8x8x128xf32, #tpu.memory_space<vmem>>, vector<1x8x128xf32>
    %105 = vector.shape_cast %104 : vector<1x8x128xf32> to vector<8x128xf32>
    %106 = vector.shape_cast %103 : vector<8x128xf32> to vector<1x8x128xf32>
    tpu.vector_store %arg2[%c7, %c0_49, %c0_50], %106 {strides = array<i32>} : memref<8x8x128xf32, #tpu.memory_space<vmem>>, vector<1x8x128xf32>,
    return
  }
  func.func @transform_0(%arg0: i32) -> (i32, i32, i32) {
    %c0_i32 = arith.constant 0 : i32
    %c0_i32_0 = arith.constant 0 : i32
    %c0_i32_1 = arith.constant 0 : i32
    return %c0_i32, %c0_i32_0, %arg0 : i32, i32, i32
  }
  func.func @transform_1(%arg0: i32) -> (i32, i32, i32) {
    %c0_i32 = arith.constant 0 : i32
    %c0_i32_0 = arith.constant 0 : i32
    %c0_i32_1 = arith.constant 0 : i32
    return %c0_i32, %c0_i32_0, %arg0 : i32, i32, i32
  }
}

</mosaic_0001>

<llo_original>
// kernel: tpu_custom_call.1
$region0: #{tpu_custom_call.1}
  #allocation0 [shape = 'u32[]', space=smem, size = 0x4, offset = 0x4, fixed_abs, tag = 'smem constant byte address 0x4 - core index']
  #allocation1 [shape = 'u32[72,128]{1,0:T(1,128)}', space=vmem, size = 0x9000, scoped, tag = 'internal scratch']
  %s0 = inlined_call_operand.hbm [shape: f32[4,8,128], index: 0, kind: input, shape index: {}]
  %s1 = inlined_call_operand.hbm [shape: f32[8,8,128], index: 1, kind: output, shape index: {}]
  %s2 = sld [smem:[#allocation0]]
  $region18: #{tpu_custom_call.1} parent=0
    _
  %s4 = ssub.s32 1, %s2
  %s5 = scalar_select 0, %s4, %s2
  $region1: #{tpu_custom_call.1} parent=0
    #allocation2 [shape = 'u8[16384]{0}', space=vmem, size = 0x4000, scoped, tag = 'input window, operand 0, single buffered']
    #allocation3 [shape = 's32[1]{0}', space=sflag, size = 0x4, scoped, tag = 'scoped memory for tpu_custom_call.1']
    #allocation4 [shape = 's32[1]{0}', space=sflag, size = 0x4, scoped, tag = 'scoped memory for tpu_custom_call.1']
    #allocation5 [shape = 'u8[32768]{0}', space=vmem, size = 0x8000, scoped, tag = 'output window, operand 0, single buffered']
    %6 = vsyncpa [#allocation3], 0
    %7 = vsyncpa [#allocation4], 0
    // Predicated region
    $region2: #{tpu_custom_call.1} parent=1 // pred_check
      _
    $region3: #{tpu_custom_call.1} parent=1 // pred_check_branch
      %9 = sbr.rel (0) target = $region5
    $region4: #{tpu_custom_call.1} parent=1 // pred_region
      %11 = vsyncadd [#allocation3], 0
      %s12 = sshll.u32 %s0, 4
      %s13 = int_to_ptr.hbm [resolvable:$true] %s12
      %s14 = sshll.u32 [#allocation2], 4
      %s15 = int_to_ptr.vmem [resolvable:$true] %s14
      %20 = dma.hbm_to_vmem [thread:$0]  %s13, 512, %s15, [#allocation3], 128, 128, 8
    $region5: #{tpu_custom_call.1} parent=1 // pred_fallthru
      _
    // Predicated region
    $region6: #{tpu_custom_call.1} parent=1 // pred_check
      _
    $region7: #{tpu_custom_call.1} parent=1 // pred_check_branch
      %22 = sbr.rel (0) target = $region9
    $region8: #{tpu_custom_call.1} parent=1 // pred_region
      %24 = dma.done [#allocation3], 512
    $region9: #{tpu_custom_call.1} parent=1 // pred_fallthru
      _
    %v25 = vld [vmem:[#allocation2] sm:$0xff]
    %s26 = scalar_lea.vmem [#allocation2], 8
    %v27 = vld [vmem:[%s26] sm:$0xff]
    %s28 = scalar_lea.vmem [#allocation2], 16
    %v29 = vld [vmem:[%s28] sm:$0xff]
    %s30 = scalar_lea.vmem [#allocation2], 24
    %v31 = vld [vmem:[%s30] sm:$0xff]
    %v32 = vsub.f32 %v27, %v25
    %v33 = vsub.f32 %v29, %v27
    %v34 = vsub.f32 %v31, %v29
    %v35 = vmul.f32 %v34, 0.5
    %v36 = vmul.f32 %v33, 0.3
    %v37 = vadd.f32 %v35, %v36
    %v38 = vmul.f32 %v32, 0.1
    %v39 = vadd.f32 %v37, %v38
    %v40 = vadd.f32 %v31, %v39
    %41 = vst [vmem:[#allocation5] sm:$0xff] %v40
    %v42 = vmul.f32 %v39, 0.5
    %v43 = vmul.f32 %v34, 0.3
    %v44 = vadd.f32 %v42, %v43
    %v45 = vmul.f32 %v33, 0.1
    %v46 = vadd.f32 %v44, %v45
    %v47 = vadd.f32 %v40, %v46
    %s48 = scalar_lea.vmem [#allocation5], 8
    %49 = vst [vmem:[%s48] sm:$0xff] %v47
    %v50 = vmul.f32 %v46, 0.5
    %v51 = vmul.f32 %v39, 0.3
    %v52 = vadd.f32 %v50, %v51
    %v53 = vmul.f32 %v34, 0.1
    %v54 = vadd.f32 %v52, %v53
    %v55 = vadd.f32 %v47, %v54
    %s56 = scalar_lea.vmem [#allocation5], 16
    %57 = vst [vmem:[%s56] sm:$0xff] %v55
    %v58 = vmul.f32 %v54, 0.5
    %v59 = vmul.f32 %v46, 0.3
    %v60 = vadd.f32 %v58, %v59
    %v61 = vmul.f32 %v39, 0.1
    %v62 = vadd.f32 %v60, %v61
    %v63 = vadd.f32 %v55, %v62
    %s64 = scalar_lea.vmem [#allocation5], 24
    %65 = vst [vmem:[%s64] sm:$0xff] %v63
    %v66 = vmul.f32 %v62, 0.5
    %v67 = vmul.f32 %v54, 0.3
    %v68 = vadd.f32 %v66, %v67
    %v69 = vmul.f32 %v46, 0.1
    %v70 = vadd.f32 %v68, %v69
    %v71 = vadd.f32 %v63, %v70
    %s72 = scalar_lea.vmem [#allocation5], 32
    %73 = vst [vmem:[%s72] sm:$0xff] %v71
    %v74 = vmul.f32 %v70, 0.5
    %v75 = vmul.f32 %v62, 0.3
    %v76 = vadd.f32 %v74, %v75
    %v77 = vmul.f32 %v54, 0.1
    %v78 = vadd.f32 %v76, %v77
    %v79 = vadd.f32 %v71, %v78
    %s80 = scalar_lea.vmem [#allocation5], 40
    %81 = vst [vmem:[%s80] sm:$0xff] %v79
    %v82 = vmul.f32 %v78, 0.5
    %v83 = vmul.f32 %v70, 0.3
    %v84 = vadd.f32 %v82, %v83
    %v85 = vmul.f32 %v62, 0.1
    %v86 = vadd.f32 %v84, %v85
    %v87 = vadd.f32 %v79, %v86
    %s88 = scalar_lea.vmem [#allocation5], 48
    %89 = vst [vmem:[%s88] sm:$0xff] %v87
    %v90 = vmul.f32 %v86, 0.5
    %v91 = vmul.f32 %v78, 0.3
    %v92 = vadd.f32 %v90, %v91
    %v93 = vmul.f32 %v70, 0.1
    %v94 = vadd.f32 %v92, %v93
    %v95 = vadd.f32 %v87, %v94
    %s96 = scalar_lea.vmem [#allocation5], 56
    %97 = vst [vmem:[%s96] sm:$0xff] %v95
    // Predicated region
    $region10: #{tpu_custom_call.1} parent=1 // pred_check
      _
    $region11: #{tpu_custom_call.1} parent=1 // pred_check_branch
      %99 = sbr.rel (0) target = $region13
    $region12: #{tpu_custom_call.1} parent=1 // pred_region
      %101 = vsyncadd [#allocation4], 0
      %s102 = sshll.u32 [#allocation5], 4
      %s103 = int_to_ptr.vmem [resolvable:$true] %s102
      %s104 = sshll.u32 %s1, 4
      %s105 = int_to_ptr.hbm [resolvable:$true] %s104
      %110 = dma.vmem_to_hbm [thread:$0]  %s103, 1024, %s105, [#allocation4], 128, 128, 8
    $region13: #{tpu_custom_call.1} parent=1 // pred_fallthru
      _
    // Predicated region
    $region14: #{tpu_custom_call.1} parent=1 // pred_check
      _
    $region15: #{tpu_custom_call.1} parent=1 // pred_check_branch
      %112 = sbr.rel (0) target = $region17
    $region16: #{tpu_custom_call.1} parent=1 // pred_region
      %114 = dma.done [#allocation4], 1024
    $region17: #{tpu_custom_call.1} parent=1 // pred_fallthru
      _
    %115 = vsyncpa [#allocation3], 1
    %116 = vsyncpa [#allocation4], 1

</llo_original>
